<compile_context>
chip_gen: v5e
topology: v5e:2x2
jax: 0.10.0
libtpu: 0.0.40
codegen_flags: <defaults>
</compile_context>

<pallas_src>
import functools

import jax
import jax.numpy as jnp
from jax.experimental import pallas as pl
from jax.experimental.pallas import tpu as pltpu

_EPS = 1e-6  # matches torch.nn.functional.pairwise_distance default eps

# VMEM budget for ONE pipeline buffer set (o1 tile + o2 tile + label tile).
# Default double-buffering => ~2x this, comfortably under the scoped limit
# below and under v7x's 64 MiB physical VMEM.
_TILE_BUDGET_BYTES = 16 << 20
_VMEM_LIMIT_BYTES = 48 << 20
# Below this many embedding elements a standalone pallas_call is pure launch /
# DMA-setup overhead; XLA fuses the tiny reduction into surrounding ops.
_MIN_KERNEL_ELEMENTS = 64 * 1024


def _cdiv(a: int, b: int) -> int:
    return -(-a // b)


def _round_up(x: int, m: int) -> int:
    return _cdiv(x, m) * m


def _pick_block_b(B: int, D: int, itemsize: int, sublane: int) -> int:
    """Sublane-aligned batch tile sized purely by the VMEM byte budget."""
    # VMEM bytes one batch row occupies inside a pipeline buffer:
    #  - two [tb, D] embedding tiles, lane-padded to multiples of 128 elems,
    #  - one [tb, 1] f32 label tile, which pads to one (8,128) f32 VMEM tile
    #    per 8 rows (= 64 B/row).
    bytes_per_row = 2 * _round_up(D, 128) * itemsize + 64
    tb = _TILE_BUDGET_BYTES // bytes_per_row
    tb = min(tb, _round_up(B, sublane))
    tb = max(sublane, (tb // sublane) * sublane)
    return int(tb)


def _contrastive_loss_kernel(o1_ref, o2_ref, label_ref, out_ref, *,
                             margin: float, true_b: int, block_b: int,
                             inner: int, boundary_tile: int, needs_mask: bool):
    c = pl.program_id(0)   # slice axis ("parallel": sharded across TCs on v7x)
    i = pl.program_id(1)   # batch-tile axis within the slice ("arbitrary")

    # Zero this slice's resident (8,128) accumulator block on its first tile.
    @pl.when(i == 0)
    def _():
        out_ref[...] = jnp.zeros_like(out_ref)

    # [tb, D] tiles; up-cast in-kernel so bf16 inputs only pay bf16 HBM traffic.
    o1 = o1_ref[...].astype(jnp.float32)
    o2 = o2_ref[...].astype(jnp.float32)
    lbl = label_ref[...].astype(jnp.float32)                       # [tb, 1]

    # PyTorch pairwise_distance: ||x1 - x2 + eps||_2 along the feature axis.
    diff = o1 - o2 + _EPS
    dist = jnp.sqrt(jnp.sum(diff * diff, axis=-1, keepdims=True))  # [tb, 1]

    # (1 - label) * d + label * clamp(margin - d, min=0)
    hinge = jnp.maximum(margin - dist, 0.0)
    per_example = (1.0 - lbl) * dist + lbl * hinge                 # [tb, 1]

    def accumulate(vals):
        # Broadcast-add this tile's partial sum into the (8,128) accumulator;
        # every element of the block carries the same running partial.
        out_ref[...] += jnp.sum(vals, keepdims=True)

    if needs_mask:
        # Global tile index.  Only the boundary tile and phantom tiles of an
        # uneven slice split carry rows >= true_b; interior tiles skip the
        # iota/compare/where entirely.
        t = c * inner + i
        is_edge = t >= boundary_tile

        @pl.when(jnp.logical_not(is_edge))
        def _():
            accumulate(per_example)

        @pl.when(is_edge)
        def _():
            # Rows past the true batch size read undefined data; jnp.where
            # does not propagate NaN/Inf from the unselected branch, so
            # masking after the sqrt is safe.
            row = jax.lax.broadcasted_iota(jnp.int32, per_example.shape, 0)
            row = row + t * block_b
            accumulate(jnp.where(row < true_b, per_example, 0.0))
    else:
        accumulate(per_example)


def _reference_loss(output1, output2, label, margin=3.0):
    # Pure-JAX reference mirroring the PyTorch forward.
    diff = output1.astype(jnp.float32) - output2.astype(jnp.float32) + _EPS
    d = jnp.sqrt(jnp.sum(diff * diff, axis=-1, keepdims=True))
    lbl = label.astype(jnp.float32).reshape(d.shape)
    return jnp.mean((1.0 - lbl) * d + lbl * jnp.maximum(margin - d, 0.0))


def contrastive_loss(output1, output2, label, margin=3.0, block_b=None,
                     force_kernel=False):
    """output1, output2: [B, D]; label: [B, 1] (or [B]). Returns scalar f32."""
    B, D = output1.shape
    assert output2.shape == (B, D)
    if label.ndim == 1:
        label = label.reshape(B, 1)
    assert label.shape == (B, 1)
    label = label.astype(jnp.float32)   # tiny; keeps the (tb,1) block 8-sublane

    # Tiny shapes: a standalone pallas_call is pure launch overhead.
    if (B * D < _MIN_KERNEL_ELEMENTS) and not force_kernel:
        return _reference_loss(output1, output2, label, margin)

    itemsize = jnp.dtype(output1.dtype).itemsize
    sublane = max(8, 32 // itemsize)          # 8 f32 / 16 bf16 / 32 int8-fp8
    tb = _pick_block_b(B, D, itemsize, sublane)
    if block_b is not None:                   # explicit override (tests/tuning)
        tb = max(sublane, _round_up(min(int(block_b), tb), sublane))
    num_tiles = _cdiv(B, tb)

    # Leading "parallel" slice axis: on v7x (2 TC/chip) the compiler shards it
    # across cores for ~2x HBM streaming; on 1-TC chips it is just a loop, so
    # only split when the (<=1 tile) phantom-tile waste is small.
    num_slices = 2 if (num_tiles >= 2 and
                       (num_tiles % 2 == 0 or num_tiles >= 16)) else 1
    inner = _cdiv(num_tiles, num_slices)
    needs_mask = (B % tb != 0) or (num_slices * inner != num_tiles)
    boundary_tile = B // tb

    def emb_index_map(c, i):
        # Clamp phantom tiles (uneven slice split) onto the last real tile so
        # their DMA stays in bounds; their contribution is masked in-kernel.
        return (jnp.minimum(c * inner + i, num_tiles - 1), 0)

    kernel = functools.partial(
        _contrastive_loss_kernel,
        margin=float(margin), true_b=int(B), block_b=int(tb),
        inner=int(inner), boundary_tile=int(boundary_tile),
        needs_mask=bool(needs_mask))

    in_bytes = (output1.size * output1.dtype.itemsize
                + output2.size * output2.dtype.itemsize
                + label.size * 4)
    cost = pl.CostEstimate(
        flops=int(4 * B * D + 8 * B),
        transcendentals=int(B),
        bytes_accessed=int(in_bytes + num_slices * 8 * 128 * 4),
    )

    out = pl.pallas_call(
        kernel,
        out_shape=jax.ShapeDtypeStruct((num_slices * 8, 128), jnp.float32),
        grid=(num_slices, inner),
        in_specs=[
            pl.BlockSpec((tb, D), emb_index_map),
            pl.BlockSpec((tb, D), emb_index_map),
            pl.BlockSpec((tb, 1), emb_index_map),
        ],
        # One resident (8,128) partial-sum block per slice; constant block
        # index along the inner ("arbitrary") axis -> VMEM accumulator with a
        # single HBM writeback per slice.
        out_specs=pl.BlockSpec((8, 128), lambda c, i: (c, 0)),
        compiler_params=pltpu.CompilerParams(
            dimension_semantics=("parallel", "arbitrary"),
            vmem_limit_bytes=_VMEM_LIMIT_BYTES,
        ),
        cost_estimate=cost,
    )(output1, output2, label)

    # Finalize in the wrapper: per-slice partials -> mean over the true B.
    partials = out[::8, 0]                    # one partial per slice block
    return jnp.sum(partials) / jnp.float32(B)


if __name__ == "__main__":
    key = jax.random.PRNGKey(0)
    k1, k2, k3, k4, k5 = jax.random.split(key, 5)

    # --- Production-like tiny case (B not a multiple of 8): single tile. ---
    B, D = 12, 32
    o1 = jax.random.normal(k1, (B, D), dtype=jnp.float32)
    o2 = jax.random.normal(k2, (B, D), dtype=jnp.float32)
    lbl = jax.random.bernoulli(k3, p=0.5, shape=(B, 1)).astype(jnp.float32)
    ref = _reference_loss(o1, o2, lbl, margin=3.0)

    loss = jax.block_until_ready(
        contrastive_loss(o1, o2, lbl, margin=3.0, force_kernel=True))
    assert jnp.allclose(loss, ref, rtol=1e-5, atol=1e-5), (loss, ref)

    # Auto-dispatch path for tiny shapes (pure JAX, no pallas_call).
    loss_small = jax.block_until_ready(contrastive_loss(o1, o2, lbl, margin=3.0))
    assert jnp.allclose(loss_small, ref, rtol=1e-6, atol=1e-6), (loss_small, ref)

    # --- 2 slices x 1 tile each; second tile padded/masked (12 % 8 != 0). ---
    loss2 = jax.block_until_ready(
        contrastive_loss(o1, o2, lbl, margin=3.0, block_b=8, force_kernel=True))
    assert jnp.allclose(loss2, ref, rtol=1e-5, atol=1e-5), (loss2, ref)

    # --- Odd tile count (17) -> uneven slice split with a clamped phantom
    #     tile, plus a partially-masked boundary tile (132 % 8 != 0). ---
    B2, D2 = 132, 32
    o1b = jax.random.normal(k4, (B2, D2), dtype=jnp.float32)
    o2b = jax.random.normal(k5, (B2, D2), dtype=jnp.float32)
    lblb = jax.random.bernoulli(k3, p=0.5, shape=(B2, 1)).astype(jnp.float32)
    ref_b = _reference_loss(o1b, o2b, lblb, margin=3.0)
    loss3 = jax.block_until_ready(
        contrastive_loss(o1b, o2b, lblb, margin=3.0, block_b=8,
                         force_kernel=True))
    assert jnp.allclose(loss3, ref_b, rtol=1e-5, atol=1e-5), (loss3, ref_b)

    # --- bf16 embeddings: 16-row sublane multiple, in-kernel f32 upcast,
    #     multi-tile single-slice path with no masking (48 % 16 == 0). ---
    B3, D3 = 48, 64
    o1c = jax.random.normal(k1, (B3, D3), dtype=jnp.bfloat16)
    o2c = jax.random.normal(k2, (B3, D3), dtype=jnp.bfloat16)
    lblc = jax.random.bernoulli(k4, p=0.5, shape=(B3, 1)).astype(jnp.float32)
    ref_c = _reference_loss(o1c, o2c, lblc, margin=3.0)
    loss4 = jax.block_until_ready(
        contrastive_loss(o1c, o2c, lblc, margin=3.0, block_b=16,
                         force_kernel=True))
    assert jnp.allclose(loss4, ref_c, rtol=1e-5, atol=1e-5), (loss4, ref_c)

    print("KERNEL_OK")
</pallas_src>

<mosaic_0001>
module attributes {stable_mosaic.version = 11 : i64} {
  func.func @_contrastive_loss_kernel(%arg0: i32, %arg1: i32, %arg2: memref<16x32xf32, #tpu.memory_space<vmem>>, %arg3: memref<16x32xf32, #tpu.memory_space<vmem>>, %arg4: memref<16x1xf32, #tpu.memory_space<vmem>>, %arg5: memref<8x128xf32, #tpu.memory_space<vmem>>) attributes {dimension_semantics = [#tpu.dimension_semantics<parallel>, #tpu.dimension_semantics<arbitrary>], iteration_bounds = array<i64: 1, 1>, scalar_prefetch = 0 : i64, scratch_operands = 0 : i64, tpu.core_type = #tpu.core_type<tc>, window_params = [{transform_indices = @transform_0, window_bounds = array<i64: 16, 32>}, {transform_indices = @transform_1, window_bounds = array<i64: 16, 32>}, {transform_indices = @transform_2, window_bounds = array<i64: 16, 1>}, {transform_indices = @transform_3, window_bounds = array<i64: 8, 128>}]} {
    %c0_i32 = arith.constant 0 : i32
    %0 = arith.cmpi eq, %arg1, %c0_i32 : i32
    %1 = arith.extui %0 : i1 to i32
    %c0_i32_0 = arith.constant 0 : i32
    %2 = arith.cmpi ne, %1, %c0_i32_0 : i32
    scf.if %2 {
      %cst_13 = arith.constant 0.000000e+00 : f32
      %30 = vector.broadcast %cst_13 : f32 to vector<8x128xf32>
      %c0_14 = arith.constant 0 : index
      %c0_15 = arith.constant 0 : index
      %31 = vector.load %arg5[%c0_14, %c0_15] : memref<8x128xf32, #tpu.memory_space<vmem>>, vector<8x128xf32>
      tpu.vector_store %arg5[%c0_14, %c0_15], %30 {strides = array<i32>} : memref<8x128xf32, #tpu.memory_space<vmem>>, vector<8x128xf32>,
    } else {
    }
    %c0 = arith.constant 0 : index
    %c0_1 = arith.constant 0 : index
    %3 = vector.load %arg2[%c0, %c0_1] : memref<16x32xf32, #tpu.memory_space<vmem>>, vector<16x32xf32>
    %c0_2 = arith.constant 0 : index
    %c0_3 = arith.constant 0 : index
    %4 = vector.load %arg3[%c0_2, %c0_3] : memref<16x32xf32, #tpu.memory_space<vmem>>, vector<16x32xf32>
    %c0_4 = arith.constant 0 : index
    %c0_5 = arith.constant 0 : index
    %5 = vector.load %arg4[%c0_4, %c0_5] : memref<16x1xf32, #tpu.memory_space<vmem>>, vector<16x1xf32>
    %6 = arith.subf %3, %4 : vector<16x32xf32>
    %cst = arith.constant 9.99999997E-7 : f32
    %7 = vector.broadcast %cst : f32 to vector<16x32xf32>
    %8 = arith.addf %6, %7 : vector<16x32xf32>
    %9 = arith.mulf %8, %8 : vector<16x32xf32>
    %cst_6 = arith.constant dense<0.000000e+00> : vector<16xf32>
    %10 = vector.multi_reduction <add>, %9, %cst_6 [1] : vector<16x32xf32> to vector<16xf32>
    %11 = vector.shape_cast %10 : vector<16xf32> to vector<16x1xf32>
    %12 = math.sqrt %11 : vector<16x1xf32>
    %cst_7 = arith.constant 3.000000e+00 : f32
    %13 = vector.broadcast %cst_7 : f32 to vector<16x1xf32>
    %14 = arith.subf %13, %12 : vector<16x1xf32>
    %cst_8 = arith.constant 0.000000e+00 : f32
    %15 = vector.broadcast %cst_8 : f32 to vector<16x1xf32>
    %16 = arith.maximumf %14, %15 : vector<16x1xf32>
    %cst_9 = arith.constant 1.000000e+00 : f32
    %17 = vector.broadcast %cst_9 : f32 to vector<16x1xf32>
    %18 = arith.subf %17, %5 : vector<16x1xf32>
    %19 = arith.mulf %18, %12 : vector<16x1xf32>
    %20 = arith.mulf %5, %16 : vector<16x1xf32>
    %21 = arith.addf %19, %20 : vector<16x1xf32>
    %c1_i32 = arith.constant 1 : i32
    %22 = arith.muli %arg0, %c1_i32 : i32
    %23 = arith.addi %22, %arg1 : i32
    %c0_i32_10 = arith.constant 0 : i32
    %24 = arith.cmpi sge, %23, %c0_i32_10 : i32
    %true = arith.constant true
    %25 = arith.xori %24, %true : i1
    %26 = arith.extui %25 : i1 to i32
    %c0_i32_11 = arith.constant 0 : i32
    %27 = arith.cmpi ne, %26, %c0_i32_11 : i32
    scf.if %27 {
      %c0_13 = arith.constant 0 : index
      %c0_14 = arith.constant 0 : index
      %30 = vector.load %arg5[%c0_13, %c0_14] : memref<8x128xf32, #tpu.memory_space<vmem>>, vector<8x128xf32>
      %31 = vector.shape_cast %21 : vector<16x1xf32> to vector<1x16x1xf32>
      %cst_15 = arith.constant dense<0.000000e+00> : vector<1xf32>
      %32 = vector.multi_reduction <add>, %31, %cst_15 [1, 2] : vector<1x16x1xf32> to vector<1xf32>
      %33 = vector.shape_cast %32 : vector<1xf32> to vector<1x1x1xf32>
      %34 = vector.extract %33[0, 0, 0] : f32 from vector<1x1x1xf32>
      %35 = vector.broadcast %34 : f32 to vector<1x1xf32>
      %36 = vector.broadcast %35 : vector<1x1xf32> to vector<8x128xf32>
      %37 = arith.addf %30, %36 : vector<8x128xf32>
      %c0_16 = arith.constant 0 : index
      %c0_17 = arith.constant 0 : index
      %38 = vector.load %arg5[%c0_16, %c0_17] : memref<8x128xf32, #tpu.memory_space<vmem>>, vector<8x128xf32>
      tpu.vector_store %arg5[%c0_16, %c0_17], %37 {strides = array<i32>} : memref<8x128xf32, #tpu.memory_space<vmem>>, vector<8x128xf32>,
    } else {
    }
    %28 = arith.extui %24 : i1 to i32
    %c0_i32_12 = arith.constant 0 : i32
    %29 = arith.cmpi ne, %28, %c0_i32_12 : i32
    scf.if %29 {
      %30 = tpu.iota {dimensions = array<i32: 0>} : vector<16x1xi32>
      %c16_i32 = arith.constant 16 : i32
      %31 = arith.muli %23, %c16_i32 : i32
      %32 = vector.broadcast %31 : i32 to vector<16x1xi32>
      %33 = arith.addi %30, %32 : vector<16x1xi32>
      %c12_i32 = arith.constant 12 : i32
      %34 = vector.broadcast %c12_i32 : i32 to vector<16x1xi32>
      %35 = arith.cmpi slt, %33, %34 : vector<16x1xi32>
      %cst_13 = arith.constant 0.000000e+00 : f32
      %36 = vector.broadcast %cst_13 : f32 to vector<16x1xf32>
      %37 = arith.select %35, %21, %36 : vector<16x1xi1>, vector<16x1xf32>
      %c0_14 = arith.constant 0 : index
      %c0_15 = arith.constant 0 : index
      %38 = vector.load %arg5[%c0_14, %c0_15] : memref<8x128xf32, #tpu.memory_space<vmem>>, vector<8x128xf32>
      %39 = vector.shape_cast %37 : vector<16x1xf32> to vector<1x16x1xf32>
      %cst_16 = arith.constant dense<0.000000e+00> : vector<1xf32>
      %40 = vector.multi_reduction <add>, %39, %cst_16 [1, 2] : vector<1x16x1xf32> to vector<1xf32>
      %41 = vector.shape_cast %40 : vector<1xf32> to vector<1x1x1xf32>
      %42 = vector.extract %41[0, 0, 0] : f32 from vector<1x1x1xf32>
      %43 = vector.broadcast %42 : f32 to vector<1x1xf32>
      %44 = vector.broadcast %43 : vector<1x1xf32> to vector<8x128xf32>
      %45 = arith.addf %38, %44 : vector<8x128xf32>
      %c0_17 = arith.constant 0 : index
      %c0_18 = arith.constant 0 : index
      %46 = vector.load %arg5[%c0_17, %c0_18] : memref<8x128xf32, #tpu.memory_space<vmem>>, vector<8x128xf32>
      tpu.vector_store %arg5[%c0_17, %c0_18], %45 {strides = array<i32>} : memref<8x128xf32, #tpu.memory_space<vmem>>, vector<8x128xf32>,
    } else {
    }
    return
  }
  func.func @transform_0(%arg0: i32, %arg1: i32) -> (i32, i32) {
    %c1_i32 = arith.constant 1 : i32
    %0 = arith.muli %arg0, %c1_i32 : i32
    %1 = arith.addi %0, %arg1 : i32
    %c0_i32 = arith.constant 0 : i32
    %2 = arith.minsi %1, %c0_i32 : i32
    %c0_i32_0 = arith.constant 0 : i32
    %c0_i32_1 = arith.constant 0 : i32
    return %2, %c0_i32_0 : i32, i32
  }
  func.func @transform_1(%arg0: i32, %arg1: i32) -> (i32, i32) {
    %c1_i32 = arith.constant 1 : i32
    %0 = arith.muli %arg0, %c1_i32 : i32
    %1 = arith.addi %0, %arg1 : i32
    %c0_i32 = arith.constant 0 : i32
    %2 = arith.minsi %1, %c0_i32 : i32
    %c0_i32_0 = arith.constant 0 : i32
    %c0_i32_1 = arith.constant 0 : i32
    return %2, %c0_i32_0 : i32, i32
  }
  func.func @transform_2(%arg0: i32, %arg1: i32) -> (i32, i32) {
    %c1_i32 = arith.constant 1 : i32
    %0 = arith.muli %arg0, %c1_i32 : i32
    %1 = arith.addi %0, %arg1 : i32
    %c0_i32 = arith.constant 0 : i32
    %2 = arith.minsi %1, %c0_i32 : i32
    %c0_i32_0 = arith.constant 0 : i32
    %c0_i32_1 = arith.constant 0 : i32
    return %2, %c0_i32_0 : i32, i32
  }
  func.func @transform_3(%arg0: i32, %arg1: i32) -> (i32, i32) {
    %c0_i32 = arith.constant 0 : i32
    %c0_i32_0 = arith.constant 0 : i32
    return %arg0, %c0_i32 : i32, i32
  }
}

</mosaic_0001>

<llo_original>
// kernel: tpu_custom_call.1
$region0: #{tpu_custom_call.1}
  #allocation0 [shape = 'u32[]', space=smem, size = 0x4, offset = 0x4, fixed_abs, tag = 'smem constant byte address 0x4 - core index']
  #allocation1 [shape = 'u32[72,128]{1,0:T(1,128)}', space=vmem, size = 0x9000, scoped, tag = 'internal scratch']
  %s0 = inlined_call_operand.vmem [shape: f32[12,32], index: 0, kind: input, shape index: {}]
  %s1 = inlined_call_operand.hbm [shape: f32[12,32], index: 1, kind: input, shape index: {}]
  %s2 = inlined_call_operand.vmem [shape: f32[12,1], index: 2, kind: input, shape index: {}]
  %s3 = inlined_call_operand.hbm [shape: f32[8,128], index: 3, kind: output, shape index: {}]
  %s4 = sld [smem:[#allocation0]]
  $region38: #{tpu_custom_call.1} parent=0
    _
  %s6 = ssub.s32 1, %s4
  %s7 = scalar_select 0, %s6, %s4
  $region1: #{tpu_custom_call.1} parent=0
    #allocation2 [shape = 'u8[8192]{0}', space=vmem, size = 0x2000, scoped, tag = 'input window, operand 1, single buffered']
    #allocation3 [shape = 's32[1]{0}', space=sflag, size = 0x4, scoped, tag = 'scoped memory for tpu_custom_call.1']
    #allocation4 [shape = 's32[1]{0}', space=sflag, size = 0x4, scoped, tag = 'scoped memory for tpu_custom_call.1']
    #allocation5 [shape = 'u8[4096]{0}', space=vmem, size = 0x1000, scoped, tag = 'output window, operand 0, single buffered']
    %8 = vsyncpa [#allocation3], 0
    %9 = vsyncpa [#allocation4], 0
    // Predicated region
    $region2: #{tpu_custom_call.1} parent=1 // pred_check
      _
    $region3: #{tpu_custom_call.1} parent=1 // pred_check_branch
      %11 = sbr.rel (0) target = $region5
    $region4: #{tpu_custom_call.1} parent=1 // pred_region
      %s12 = sadd.s32 0, 0
      %p13 = scmp.lt.s32.totalorder %s12, 0
      %s14 = scalar_select %p13, %s12, 0
      %s15 = smul.u32 2, %s14
      %p16 = scmp.lt.s32.totalorder %s15, 1
      %s17 = scalar_select %p16, %s15, 1
      %s18 = smul.addr %s17, 8
      %s19 = scalar_lea.vmem %s0, %s18
      %s20 = sadd.s32 0, 0
      %p21 = scmp.lt.s32.totalorder %s20, 0
      %s22 = scalar_select %p21, %s20, 0
      %s23 = smul.u32 2, %s22
    $region5: #{tpu_custom_call.1} parent=1 // pred_fallthru
      _
    // Predicated region
    $region6: #{tpu_custom_call.1} parent=1 // pred_check
      _
    $region7: #{tpu_custom_call.1} parent=1 // pred_check_branch
      %25 = sbr.rel (0) target = $region9
    $region8: #{tpu_custom_call.1} parent=1 // pred_region
      %s26 = sadd.s32 0, 0
      %p27 = scmp.lt.s32.totalorder %s26, 0
      %s28 = scalar_select %p27, %s26, 0
      %s29 = smul.u32 2, %s28
      %31 = vsyncadd [#allocation3], 0
      %s32 = smul.addr %s29, 8
      %s33 = scalar_lea.hbm %s1, %s32
      %s34 = sshll.u32 %s33, 4
      %s35 = int_to_ptr.hbm [resolvable:$true] %s34
      %s36 = sshll.u32 [#allocation2], 4
      %s37 = int_to_ptr.vmem [resolvable:$true] %s36
      %42 = dma.hbm_to_vmem [thread:$0]  %s35, 256, %s37, [#allocation3], 128, 128, 8
    $region9: #{tpu_custom_call.1} parent=1 // pred_fallthru
      _
    // Predicated region
    $region10: #{tpu_custom_call.1} parent=1 // pred_check
      _
    $region11: #{tpu_custom_call.1} parent=1 // pred_check_branch
      %44 = sbr.rel (0) target = $region13
    $region12: #{tpu_custom_call.1} parent=1 // pred_region
      %s45 = sadd.s32 0, 0
      %p46 = scmp.lt.s32.totalorder %s45, 0
      %s47 = scalar_select %p46, %s45, 0
      %s48 = smul.u32 2, %s47
      %p49 = scmp.lt.s32.totalorder %s48, 1
      %s50 = scalar_select %p49, %s48, 1
      %s51 = smul.addr %s50, 8
      %s52 = scalar_lea.vmem %s2, %s51
      %s53 = sadd.s32 0, 0
      %p54 = scmp.lt.s32.totalorder %s53, 0
      %s55 = scalar_select %p54, %s53, 0
      %s56 = smul.u32 2, %s55
    $region13: #{tpu_custom_call.1} parent=1 // pred_fallthru
      _
    // Predicated region
    $region14: #{tpu_custom_call.1} parent=1 // pred_check
      _
    $region15: #{tpu_custom_call.1} parent=1 // pred_check_branch
      %58 = sbr.rel (0) target = $region17
    $region16: #{tpu_custom_call.1} parent=1 // pred_region
      %60 = dma.done [#allocation3], 256
    $region17: #{tpu_custom_call.1} parent=1 // pred_fallthru
      _
    %s61 = sadd.s32 0, 0
    %p62 = scmp.lt.s32.totalorder %s61, 0
    %s63 = scalar_select %p62, %s61, 0
    %s64 = smul.u32 2, %s63
    %p65 = scmp.lt.s32.totalorder %s64, 1
    %s66 = scalar_select %p65, %s64, 1
    %s67 = smul.addr %s66, 8
    %s68 = scalar_lea.vmem %s0, %s67
    %s69 = sadd.s32 0, 0
    %p70 = scmp.lt.s32.totalorder %s69, 0
    %s71 = scalar_select %p70, %s69, 0
    %s72 = smul.u32 2, %s71
    %p73 = scmp.lt.s32.totalorder %s72, 1
    %s74 = scalar_select %p73, %s72, 1
    %s75 = smul.addr %s74, 8
    %s76 = scalar_lea.vmem %s2, %s75
    %s77 = sadd.s32 0, 0
    %p78 = scmp.lt.s32.totalorder %s77, 0
    %s79 = scalar_select %p78, %s77, 0
    %s80 = smul.u32 2, %s79
    %p81 = scmp.lt.s32.totalorder %s80, 1
    %s82 = scalar_select %p81, %s80, 1
    %s83 = smul.addr %s82, 8
    %s84 = scalar_lea.vmem %s0, %s83
    %s85 = sadd.s32 0, 0
    %p86 = scmp.lt.s32.totalorder %s85, 0
    %s87 = scalar_select %p86, %s85, 0
    %s88 = smul.u32 2, %s87
    %s89 = sadd.s32 0, 0
    %p90 = scmp.lt.s32.totalorder %s89, 0
    %s91 = scalar_select %p90, %s89, 0
    %s92 = smul.u32 2, %s91
    %s93 = sadd.s32 0, 0
    %p94 = scmp.lt.s32.totalorder %s93, 0
    %s95 = scalar_select %p94, %s93, 0
    %s96 = smul.u32 2, %s95
    %p97 = scmp.lt.s32.totalorder %s96, 1
    %s98 = scalar_select %p97, %s96, 1
    %s99 = smul.addr %s98, 8
    %s100 = scalar_lea.vmem %s2, %s99
    %s101 = sadd.s32 0, 0
    %p102 = scmp.lt.s32.totalorder %s101, 0
    %s103 = scalar_select %p102, %s101, 0
    %s104 = smul.u32 2, %s103
    %p105 = scmp.eq.s32.totalorder 0, 0
    // Predicated region
    $region18: #{tpu_custom_call.1} parent=1 // pred_check
      %p106 = pneg %p105
    $region19: #{tpu_custom_call.1} parent=1 // pred_check_branch
      %108 = sbr.rel (%p106) target = $region21
    $region20: #{tpu_custom_call.1} parent=1 // pred_region
      %109 = vst [vmem:[#allocation5] sm:$0xff] 0.0
    $region21: #{tpu_custom_call.1} parent=1 // pred_fallthru
      _
    %v110 = vld [vmem:[%s84] sm:$0xff]
    %v111 = vld [vmem:[%s84 + $0x8] sm:$0xff]
    %v112 = vld [vmem:[#allocation2] sm:$0xff]
    %v113 = vld [vmem:[#allocation2 + $0x8] sm:$0xff]
    %v114 = vld [vmem:[%s100] sm:$0xff]
    %v115 = vld [vmem:[%s100 + $0x8] sm:$0xff]
    %v116 = vsub.f32 %v110, %v112
    %v117 = vsub.f32 %v111, %v113
    %v118 = vadd.f32 %v116, 1e-06
    %v119 = vadd.f32 %v117, 1e-06
    %v120 = vmul.f32 %v118, %v118
    %v121 = vmul.f32 %v119, %v119
    %vm122 = vcmask 261120
    %v123 = vsel %vm122, %v120, 0.0
    %124 = vadd.xlane.f32.xlu0 %v123
    %v125 = vpop.xlane.xlu0 %124
    %v126 = vsel %vm122, %v121, 0.0
    %127 = vadd.xlane.f32.xlu0 %v126
    %v128 = vpop.xlane.xlu0 %127
    %v129 = vrsqrt.pop %v125
    %v130 = vmul.f32 %v129, %v125
    %v131 = vmul.f32 %v130, %v129
    %v132 = vmul.f32 0.5, %v131
    %v133 = vsub.f32 1.5, %v132
    %v134 = vmul.f32 %v129, %v133
    %v135 = vmul.f32 %v125, %v134
    %vm136 = vcmp.eq.f32.partialorder %v125, inf
    %v137 = vsel %vm136, %v125, %v135
    %vm138 = vcmp.eq.f32.partialorder %v125, 0.0
    %v139 = vand.u32 %v125, 2147483648
    %v140 = vsel %vm138, %v139, %v137
    %v141 = vrsqrt.pop %v128
    %v142 = vmul.f32 %v141, %v128
    %v143 = vmul.f32 %v142, %v141
    %v144 = vmul.f32 0.5, %v143
    %v145 = vsub.f32 1.5, %v144
    %v146 = vmul.f32 %v141, %v145
    %v147 = vmul.f32 %v128, %v146
    %vm148 = vcmp.eq.f32.partialorder %v128, inf
    %v149 = vsel %vm148, %v128, %v147
    %vm150 = vcmp.eq.f32.partialorder %v128, 0.0
    %v151 = vand.u32 %v128, 2147483648
    %v152 = vsel %vm150, %v151, %v149
    %v153 = vsub.f32 3.0, %v140
    %v154 = vsub.f32 3.0, %v152
    %v155 = vmax.f32 %v153, 0.0
    %v156 = vmax.f32 %v154, 0.0
    %v157 = vsub.f32 1.0, %v114
    %v158 = vsub.f32 1.0, %v115
    %v159 = vmul.f32 %v157, %v140
    %v160 = vmul.f32 %v158, %v152
    %v161 = vmul.f32 %v114, %v155
    %v162 = vmul.f32 %v115, %v156
    %v163 = vadd.f32 %v159, %v161
    %v164 = vadd.f32 %v160, %v162
    %s165 = sadd.s32 0, 0
    %p166 = scmp.ge.s32.totalorder %s165, 0
    %p167 = scmp.lt.s32.totalorder %s165, 0
    // Predicated region
    $region22: #{tpu_custom_call.1} parent=1 // pred_check
      %p168 = pneg %p167
    $region23: #{tpu_custom_call.1} parent=1 // pred_check_branch
      %170 = sbr.rel (%p168) target = $region25
    $region24: #{tpu_custom_call.1} parent=1 // pred_region
      %v171 = vld [vmem:[#allocation5] sm:$0xff]
      %vm172 = vcmask 7168
      %v173 = vsel %vm172, %v163, 0.0
      %v174 = vsel %vm172, %v164, 0.0
      %v175 = vadd.f32 %v173, %v174
      %176 = vadd.xlane.f32.xlu0 %v175
      %v177 = vpop.xlane.xlu0 %176
      %v178 = vrot.slane %v177, 4
      %v179 = vadd.f32 %v177, %v178
      %v180 = vrot.slane %v179, 2
      %v181 = vadd.f32 %v179, %v180
      %v182 = vrot.slane %v181, 1
      %v183 = vadd.f32 %v181, %v182
      %s184 = vtos %v183
      %v185 = vstv %s184
      %v186 = vadd.f32 %v171, %v185
      %187 = vst [vmem:[#allocation5] sm:$0xff] %v186
    $region25: #{tpu_custom_call.1} parent=1 // pred_fallthru
      _
    // Predicated region
    $region26: #{tpu_custom_call.1} parent=1 // pred_check
      %p188 = pneg %p166
    $region27: #{tpu_custom_call.1} parent=1 // pred_check_branch
      %190 = sbr.rel (%p188) target = $region29
    $region28: #{tpu_custom_call.1} parent=1 // pred_region
      %v191 = vlaneseq
      %v192 = vshrl.u32 %v191, 7
      %v193 = vadd.s32 %v192, 8
      %s194 = smul.u32 %s165, 16
      %v195 = vstv %s194
      %v196 = vadd.s32 %v192, %v195
      %v197 = vadd.s32 %v193, %v195
      %vm198 = vcmp.lt.s32.totalorder %v196, 12
      %vm199 = vcmp.lt.s32.totalorder %v197, 12
      %v200 = vsel %vm198, %v163, 0.0
      %v201 = vsel %vm199, %v164, 0.0
      %v202 = vld [vmem:[#allocation5] sm:$0xff]
      %vm203 = vcmask 7168
      %v204 = vsel %vm203, %v200, 0.0
      %v205 = vsel %vm203, %v201, 0.0
      %v206 = vadd.f32 %v204, %v205
      %207 = vadd.xlane.f32.xlu0 %v206
      %v208 = vpop.xlane.xlu0 %207
      %v209 = vrot.slane %v208, 4
      %v210 = vadd.f32 %v208, %v209
      %v211 = vrot.slane %v210, 2
      %v212 = vadd.f32 %v210, %v211
      %v213 = vrot.slane %v212, 1
      %v214 = vadd.f32 %v212, %v213
      %s215 = vtos %v214
      %v216 = vstv %s215
      %v217 = vadd.f32 %v202, %v216
      %218 = vst [vmem:[#allocation5] sm:$0xff] %v217
    $region29: #{tpu_custom_call.1} parent=1 // pred_fallthru
      _
    // Predicated region
    $region30: #{tpu_custom_call.1} parent=1 // pred_check
      _
    $region31: #{tpu_custom_call.1} parent=1 // pred_check_branch
      %220 = sbr.rel (0) target = $region33
    $region32: #{tpu_custom_call.1} parent=1 // pred_region
      %222 = vsyncadd [#allocation4], 0
      %s224 = sshll.u32 [#allocation5], 4
      %s225 = int_to_ptr.vmem [resolvable:$true] %s224
      %s226 = sshll.u32 %s3, 4
      %s227 = int_to_ptr.hbm [resolvable:$true] %s226
      %229 = dma.vmem_to_hbm [thread:$0]  %s225, 128, %s227, [#allocation4]
    $region33: #{tpu_custom_call.1} parent=1 // pred_fallthru
      _
    // Predicated region
    $region34: #{tpu_custom_call.1} parent=1 // pred_check
      _
    $region35: #{tpu_custom_call.1} parent=1 // pred_check_branch
      %231 = sbr.rel (0) target = $region37
    $region36: #{tpu_custom_call.1} parent=1 // pred_region
      %233 = dma.done [#allocation4], 128
    $region37: #{tpu_custom_call.1} parent=1 // pred_fallthru
      _
    %234 = vsyncpa [#allocation3], 1
    %235 = vsyncpa [#allocation4], 1

</llo_original>
